<compile_context>
chip_gen: v6e
topology: v6e:2x2x1
jax: 0.10.0
libtpu: 0.0.40
codegen_flags: <defaults>
</compile_context>

<pallas_src>
import functools

import jax
import jax.numpy as jnp
from jax.experimental import pallas as pl
from jax.experimental.pallas import tpu as pltpu


def _round_down(x, m):
    return max(m, (x // m) * m)


# ---------------------------------------------------------------------------
# Kernel 1: CLIP contrastive loss, row-tiled.
#   (CE(logits_per_image, arange) + CE(logits_per_text, arange)) / 2
#   = 0.5*(mean(row_lse) + mean(col_lse)) - mean(diag)
# One matmul per row tile; column-LSE partials are combined outside the kernel,
# so row tiles are fully independent ("parallel" — splits across v7x TCs).
# ---------------------------------------------------------------------------
def _clip_loss_kernel(img_ref, txt_all_ref, txt_rows_ref, scale_ref,
                      row_part_ref, col_max_ref, col_sum_ref, *, total_b):
    i = pl.program_id(0)
    tile_b = img_ref.shape[0]

    scale = scale_ref[0, 0]

    img = img_ref[...]          # (tile_b, D) native dtype — bf16 stays bf16 on the MXU
    txt = txt_all_ref[...]      # (B, D) native dtype, resident across row tiles

    # Contract on D directly (lhs[M,K] . rhs[N,K]) — no materialized transpose.
    dn = (((1,), (1,)), ((), ()))
    logits = jax.lax.dot_general(img, txt, dn,
                                 preferred_element_type=jnp.float32)   # (tile_b, B) f32
    logits = logits * scale     # single f32 pass, hidden under the MXU

    # Ragged last row tile (static: only traced when tile_b does not divide B).
    if total_b % tile_b != 0:
        row_ids = i * tile_b + jax.lax.broadcasted_iota(jnp.int32, (tile_b, 1), 0)
        row_valid = row_ids < total_b
    else:
        row_valid = None

    # Image->text direction: per-row LSE.
    m_r = jnp.max(logits, axis=1, keepdims=True)
    lse_r = m_r + jnp.log(jnp.sum(jnp.exp(logits - m_r), axis=1, keepdims=True))

    # Correct-pair (diagonal) logits straight from the features — no (B,B) mask.
    diag = scale * jnp.sum(img.astype(jnp.float32) * txt_rows_ref[...].astype(jnp.float32),
                           axis=1, keepdims=True)

    if row_valid is not None:
        lse_r = jnp.where(row_valid, lse_r, 0.0)
        diag = jnp.where(row_valid, diag, 0.0)
        logits = jnp.where(row_valid, logits, -jnp.inf)   # drop padded rows from col-LSE

    row_lse_sum = jnp.sum(lse_r)
    diag_sum = jnp.sum(diag)

    # Text->image direction: per-tile column partials (max / sum of exp), combined outside.
    c_max = jnp.max(logits, axis=0, keepdims=True)                    # (1, B)
    c_sum = jnp.sum(jnp.exp(logits - c_max), axis=0, keepdims=True)   # (1, B)
    col_max_ref[...] = c_max.reshape(col_max_ref.shape)
    col_sum_ref[...] = c_sum.reshape(col_sum_ref.shape)

    # Lane-dense (1, 8, 128) scalar partials: [0,0,0] = row-LSE sum, [0,0,1] = diag sum.
    sub = jax.lax.broadcasted_iota(jnp.int32, row_part_ref.shape, 1)
    lane = jax.lax.broadcasted_iota(jnp.int32, row_part_ref.shape, 2)
    row_part_ref[...] = jnp.where((sub == 0) & (lane == 0), row_lse_sum,
                                  jnp.where((sub == 0) & (lane == 1), diag_sum, 0.0))


def clip_contrastive_loss(image_features, text_features, logit_scale, tile_b=None):
    B, D = image_features.shape
    itemsize = jnp.dtype(image_features.dtype).itemsize
    align_b = max(8, 32 // max(1, itemsize))     # bf16 packs 2 rows/sublane, int8 4

    if tile_b is None:
        # Single block up to 512 rows; otherwise ~256-row tiles (each tile's (tile_b, B)
        # f32 logits stays a few MiB even at multi-K batch, well inside 64 MiB v7x VMEM).
        tile_b = B if B <= 512 else _round_down(256, align_b)
    nt = pl.cdiv(B, tile_b)

    scale = jnp.reshape(jnp.asarray(logit_scale, jnp.float32), (1, 1))
    kernel = functools.partial(_clip_loss_kernel, total_b=B)

    row_part, col_max, col_sum = pl.pallas_call(
        kernel,
        out_shape=(
            jax.ShapeDtypeStruct((nt, 8, 128), jnp.float32),
            jax.ShapeDtypeStruct((nt, 1, B), jnp.float32),
            jax.ShapeDtypeStruct((nt, 1, B), jnp.float32),
        ),
        grid_spec=pltpu.PrefetchScalarGridSpec(
            num_scalar_prefetch=0,
            grid=(nt,),
            in_specs=[
                pl.BlockSpec((tile_b, D), lambda i: (i, 0)),   # image rows
                pl.BlockSpec((B, D), lambda i: (0, 0)),        # text, full & resident
                pl.BlockSpec((tile_b, D), lambda i: (i, 0)),   # text rows (diagonal)
                pl.BlockSpec((1, 1), lambda i: (0, 0)),        # logit scale
            ],
            out_specs=[
                pl.BlockSpec((1, 8, 128), lambda i: (i, 0, 0)),
                pl.BlockSpec((1, 1, B), lambda i: (i, 0, 0)),
                pl.BlockSpec((1, 1, B), lambda i: (i, 0, 0)),
            ],
        ),
        compiler_params=pltpu.CompilerParams(
            dimension_semantics=("parallel",),         # independent row tiles → 2 TCs on v7x
            vmem_limit_bytes=64 * 1024 * 1024,
        ),
    )(image_features, text_features, text_features, scale)

    # Tiny (nt, B) combine in plain JAX.
    row_lse_sum = jnp.sum(row_part[:, 0, 0])
    diag_sum = jnp.sum(row_part[:, 0, 1])
    cmax = col_max[:, 0, :]                                          # (nt, B)
    csum = col_sum[:, 0, :]
    gmax = jnp.max(cmax, axis=0)                                     # (B,)
    lse_t = gmax + jnp.log(jnp.sum(csum * jnp.exp(cmax - gmax), axis=0))
    return 0.5 * (row_lse_sum / B + jnp.mean(lse_t)) - diag_sum / B


# ---------------------------------------------------------------------------
# Kernel 2: caption cross-entropy with ignore_index == pad_id.
#   Grid = (token tiles ["parallel"], vocab tiles ["arbitrary"]), online logsumexp
#   over the vocab axis in VMEM scratch, per-token-tile lane-dense partial
#   (loss_sum, count) output, reduced outside.
# ---------------------------------------------------------------------------
def _caption_ce_kernel(logits_ref, labels_ref, out_ref, m_ref, l_ref, ll_ref, *,
                       pad_id, total_n, total_v):
    i = pl.program_id(0)
    j = pl.program_id(1)
    nv = pl.num_programs(1)
    tile_n, tile_v = logits_ref.shape

    @pl.when(j == 0)
    def _():
        m_ref[...] = jnp.full_like(m_ref, -jnp.inf)
        l_ref[...] = jnp.zeros_like(l_ref)
        ll_ref[...] = jnp.zeros_like(ll_ref)

    logits = logits_ref[...].astype(jnp.float32)         # [tile_n, tile_v]
    labels = labels_ref[...]                             # [tile_n, 1] int32

    col_iota = jax.lax.broadcasted_iota(jnp.int32, (tile_n, tile_v), 1)
    if total_v % tile_v != 0:                            # static: only for ragged vocab
        # Compare against a scalar limit — no full-tile vocab-id add pass.
        logits = jnp.where(col_iota < (total_v - j * tile_v), logits, -jnp.inf)

    # Online logsumexp over the vocab (reduction) axis.
    m_prev = m_ref[...]
    m_new = jnp.maximum(m_prev, jnp.max(logits, axis=1, keepdims=True))
    l_ref[...] = l_ref[...] * jnp.exp(m_prev - m_new) + jnp.sum(
        jnp.exp(logits - m_new), axis=1, keepdims=True)
    m_ref[...] = m_new

    # logits[n, labels[n]] for labels falling in this vocab tile: compare the local
    # iota against the shifted label ([tile_n,1] subtract — no full-tile id add).
    local_label = labels - j * tile_v
    ll_ref[...] += jnp.sum(jnp.where(col_iota == local_label, logits, 0.0),
                           axis=1, keepdims=True)

    @pl.when(j == nv - 1)
    def _():
        lse = m_ref[...] + jnp.log(l_ref[...])           # [tile_n, 1]
        valid = labels != pad_id
        if total_n % tile_n != 0:                        # static: ragged last row tile
            row_ids = i * tile_n + jax.lax.broadcasted_iota(jnp.int32, (tile_n, 1), 0)
            valid = jnp.logical_and(valid, row_ids < total_n)
        per_tok = jnp.where(valid, lse - ll_ref[...], 0.0)
        loss_sum = jnp.sum(per_tok)
        count = jnp.sum(valid.astype(jnp.float32))
        # Lane-dense (1, 8, 128) partial: [0,0,0] = masked loss sum, [0,0,1] = token count.
        sub = jax.lax.broadcasted_iota(jnp.int32, out_ref.shape, 1)
        lane = jax.lax.broadcasted_iota(jnp.int32, out_ref.shape, 2)
        out_ref[...] = jnp.where((sub == 0) & (lane == 0), loss_sum,
                                 jnp.where((sub == 0) & (lane == 1), count, 0.0))


def caption_cross_entropy(logits, labels, pad_id=0, tile_n=None, tile_v=None):
    """Mean CE over non-pad tokens; matches
    F.cross_entropy(logits.permute(0,2,1), labels, ignore_index=pad_id).
    (Returns NaN when every label == pad_id, same as torch.)"""
    B, T, V = logits.shape
    N = B * T
    logits2d = logits.reshape(N, V)                     # stream native dtype (bf16 OK)
    labels2d = labels.reshape(N, 1).astype(jnp.int32)
    itemsize = jnp.dtype(logits.dtype).itemsize

    # Sublane packing: f32 -> 8, bf16 -> 16, int8/fp8 -> 32 rows per packed sublane group.
    align_n = max(8, 32 // max(1, itemsize))

    if tile_n is None:
        tile_n = N if N <= 256 else _round_down(256, align_n)
        # Guarantee >= 2 row tiles so the "parallel" axis can split across v7x's 2 TCs.
        if tile_n == N and N >= 2 * align_n:
            tile_n = _round_down(N // 2, align_n)

    if tile_v is None:
        # ~4 MiB per streamed block: amortizes the ~0.35us/grid-step overhead while
        # double-buffered blocks + f32 intermediates stay well under 64 MiB VMEM.
        target_bytes = 4 * 1024 * 1024
        tv = max(128, target_bytes // max(1, tile_n * itemsize))
        if tv >= V:
            tile_v = V
        else:
            tv = _round_down(tv, 128)
            tile_v = tv
            cand = tv
            while cand >= max(128, tv // 2):            # prefer a divisor of V: drops the
                if V % cand == 0:                       # ragged-column mask passes entirely
                    tile_v = cand
                    break
                cand -= 128

    nt = pl.cdiv(N, tile_n)
    nv = pl.cdiv(V, tile_v)

    kernel = functools.partial(_caption_ce_kernel, pad_id=pad_id, total_n=N, total_v=V)
    partials = pl.pallas_call(
        kernel,
        out_shape=jax.ShapeDtypeStruct((nt, 8, 128), jnp.float32),
        grid_spec=pltpu.PrefetchScalarGridSpec(
            num_scalar_prefetch=0,
            grid=(nt, nv),                              # vocab (reduction) axis last
            in_specs=[
                pl.BlockSpec((tile_n, tile_v), lambda i, j: (i, j)),
                pl.BlockSpec((tile_n, 1), lambda i, j: (i, 0)),
            ],
            out_specs=pl.BlockSpec((1, 8, 128), lambda i, j: (i, 0, 0)),
            scratch_shapes=[
                pltpu.VMEM((tile_n, 1), jnp.float32),   # running max
                pltpu.VMEM((tile_n, 1), jnp.float32),   # running sum of exp
                pltpu.VMEM((tile_n, 1), jnp.float32),   # label logit accumulator
            ],
        ),
        compiler_params=pltpu.CompilerParams(
            dimension_semantics=("parallel", "arbitrary"),  # token axis shards across v7x TCs
            vmem_limit_bytes=64 * 1024 * 1024,
        ),
    )(logits2d, labels2d)

    loss_sum = jnp.sum(partials[:, 0, 0])
    count = jnp.sum(partials[:, 0, 1])
    return loss_sum / count


# ---------------------------------------------------------------------------
# CoCaLoss wrapper (world_size == 1).
# ---------------------------------------------------------------------------
def coca_loss(image_features, text_features, logits, labels, logit_scale,
              caption_loss_weight, clip_loss_weight, pad_id=0,
              tile_n=None, tile_v=None, tile_b=None):
    if clip_loss_weight:
        clip_loss = clip_loss_weight * clip_contrastive_loss(
            image_features, text_features, logit_scale, tile_b=tile_b)
    else:
        clip_loss = jnp.float32(0.0)
    caption_loss = caption_loss_weight * caption_cross_entropy(
        logits, labels, pad_id=pad_id, tile_n=tile_n, tile_v=tile_v)
    return clip_loss, caption_loss


if __name__ == "__main__":
    key = jax.random.PRNGKey(0)
    k_img, k_txt, k_log, k_lab = jax.random.split(key, 4)

    B, D = 16, 32       # batch, embed dim
    T, V = 8, 256       # caption length, vocab size
    pad_id = 0

    image_features = jax.random.normal(k_img, (B, D), jnp.float32)
    text_features = jax.random.normal(k_txt, (B, D), jnp.float32)
    image_features = image_features / jnp.linalg.norm(image_features, axis=-1, keepdims=True)
    text_features = text_features / jnp.linalg.norm(text_features, axis=-1, keepdims=True)

    # Caption logits in bf16 — streamed straight into the kernel (no wrapper upcast).
    cap_logits = jax.random.normal(k_log, (B, T, V), jnp.float32).astype(jnp.bfloat16)
    cap_labels = jax.random.randint(k_lab, (B, T), 0, V, jnp.int32)
    cap_labels = cap_labels.at[:, -1].set(pad_id)   # exercise ignore_index path

    logit_scale = jnp.float32(14.2857)

    # Small explicit tiles to exercise multi-tile grids: 2 CLIP row tiles (column-LSE
    # combine), 8 token tiles x 2 vocab tiles for the caption CE online LSE.
    clip_loss, caption_loss = coca_loss(
        image_features, text_features, cap_logits, cap_labels, logit_scale,
        caption_loss_weight=2.0, clip_loss_weight=1.0, pad_id=pad_id,
        tile_n=16, tile_v=128, tile_b=8)
    jax.block_until_ready((clip_loss, caption_loss))

    # ---- pure-JAX reference (sanity check) ----
    lg = cap_logits.astype(jnp.float32).reshape(B * T, V)
    lb = cap_labels.reshape(B * T)
    lse = jax.nn.logsumexp(lg, axis=1)
    tok = lse - jnp.take_along_axis(lg, lb[:, None], axis=1)[:, 0]
    msk = lb != pad_id
    ref_cap = 2.0 * jnp.sum(jnp.where(msk, tok, 0.0)) / jnp.sum(msk)

    li = logit_scale * jnp.dot(image_features, text_features.T,
                               precision=jax.lax.Precision.HIGHEST)
    ref_clip = 1.0 * (0.5 * (jnp.mean(jax.nn.logsumexp(li, axis=1))
                             + jnp.mean(jax.nn.logsumexp(li.T, axis=1)))
                      - jnp.mean(jnp.diag(li)))

    assert abs(float(caption_loss) - float(ref_cap)) < 1e-3 * max(1.0, abs(float(ref_cap)))
    assert abs(float(clip_loss) - float(ref_clip)) < 5e-2 * max(1.0, abs(float(ref_clip)))

    print("KERNEL_OK")
</pallas_src>

<mosaic_0001>
module attributes {stable_mosaic.version = 11 : i64} {
  func.func @_clip_loss_kernel(%arg0: i32, %arg1: memref<8x32xf32, #tpu.memory_space<vmem>>, %arg2: memref<16x32xf32, #tpu.memory_space<vmem>>, %arg3: memref<8x32xf32, #tpu.memory_space<vmem>>, %arg4: memref<1x1xf32, #tpu.memory_space<vmem>>, %arg5: memref<1x8x128xf32, #tpu.memory_space<vmem>>, %arg6: memref<1x1x16xf32, #tpu.memory_space<vmem>>, %arg7: memref<1x1x16xf32, #tpu.memory_space<vmem>>) attributes {dimension_semantics = [#tpu.dimension_semantics<parallel>], iteration_bounds = array<i64: 2>, scalar_prefetch = 0 : i64, scratch_operands = 0 : i64, tpu.core_type = #tpu.core_type<tc>, window_params = [{transform_indices = @transform_0, window_bounds = array<i64: 8, 32>}, {pipeline_mode = #tpu.pipeline_mode<synchronous>, transform_indices = @transform_1, window_bounds = array<i64: 16, 32>}, {transform_indices = @transform_2, window_bounds = array<i64: 8, 32>}, {pipeline_mode = #tpu.pipeline_mode<synchronous>, transform_indices = @transform_3, window_bounds = array<i64: 1, 1>}, {transform_indices = @transform_4, window_bounds = array<i64: 1, 8, 128>}, {transform_indices = @transform_5, window_bounds = array<i64: 1, 1, 16>}, {transform_indices = @transform_6, window_bounds = array<i64: 1, 1, 16>}]} {
    %c0 = arith.constant 0 : index
    %c0_0 = arith.constant 0 : index
    %0 = vector.load %arg4[%c0, %c0_0] : memref<1x1xf32, #tpu.memory_space<vmem>>, vector<1x1xf32>
    %1 = vector.extract %0[0, 0] : f32 from vector<1x1xf32>
    %c0_1 = arith.constant 0 : index
    %c0_2 = arith.constant 0 : index
    %2 = vector.load %arg1[%c0_1, %c0_2] : memref<8x32xf32, #tpu.memory_space<vmem>>, vector<8x32xf32>
    %c0_3 = arith.constant 0 : index
    %c0_4 = arith.constant 0 : index
    %3 = vector.load %arg2[%c0_3, %c0_4] : memref<16x32xf32, #tpu.memory_space<vmem>>, vector<16x32xf32>
    %cst = arith.constant dense<0.000000e+00> : vector<8x16xf32>
    %4 = tpu.matmul %2, %3, %cst {dimension_numbers = #tpu.dot_dimension_numbers<[1], [1], [0], [0], [0, 0, 1, 0], [], []>} : vector<8x32xf32>, vector<16x32xf32>, vector<8x16xf32> -> vector<8x16xf32>
    %5 = vector.broadcast %1 : f32 to vector<8x16xf32>
    %6 = arith.mulf %4, %5 : vector<8x16xf32>
    %cst_5 = arith.constant dense<0xFF800000> : vector<8xf32>
    %7 = vector.multi_reduction <maximumf>, %6, %cst_5 [1] : vector<8x16xf32> to vector<8xf32>
    %8 = vector.shape_cast %7 : vector<8xf32> to vector<8x1xf32>
    %9 = vector.broadcast %8 : vector<8x1xf32> to vector<8x16xf32>
    %10 = arith.subf %6, %9 : vector<8x16xf32>
    %11 = math.exp %10 : vector<8x16xf32>
    %cst_6 = arith.constant dense<0.000000e+00> : vector<8xf32>
    %12 = vector.multi_reduction <add>, %11, %cst_6 [1] : vector<8x16xf32> to vector<8xf32>
    %13 = vector.shape_cast %12 : vector<8xf32> to vector<8x1xf32>
    %14 = math.log %13 : vector<8x1xf32>
    %15 = arith.addf %8, %14 : vector<8x1xf32>
    %c0_7 = arith.constant 0 : index
    %c0_8 = arith.constant 0 : index
    %16 = vector.load %arg3[%c0_7, %c0_8] : memref<8x32xf32, #tpu.memory_space<vmem>>, vector<8x32xf32>
    %17 = arith.mulf %2, %16 : vector<8x32xf32>
    %cst_9 = arith.constant dense<0.000000e+00> : vector<8xf32>
    %18 = vector.multi_reduction <add>, %17, %cst_9 [1] : vector<8x32xf32> to vector<8xf32>
    %19 = vector.shape_cast %18 : vector<8xf32> to vector<8x1xf32>
    %20 = vector.broadcast %1 : f32 to vector<8x1xf32>
    %21 = arith.mulf %20, %19 : vector<8x1xf32>
    %22 = vector.shape_cast %15 : vector<8x1xf32> to vector<1x8x1xf32>
    %cst_10 = arith.constant dense<0.000000e+00> : vector<1xf32>
    %23 = vector.multi_reduction <add>, %22, %cst_10 [1, 2] : vector<1x8x1xf32> to vector<1xf32>
    %24 = vector.shape_cast %23 : vector<1xf32> to vector<1x1x1xf32>
    %25 = vector.extract %24[0, 0, 0] : f32 from vector<1x1x1xf32>
    %26 = vector.shape_cast %21 : vector<8x1xf32> to vector<1x8x1xf32>
    %cst_11 = arith.constant dense<0.000000e+00> : vector<1xf32>
    %27 = vector.multi_reduction <add>, %26, %cst_11 [1, 2] : vector<1x8x1xf32> to vector<1xf32>
    %28 = vector.shape_cast %27 : vector<1xf32> to vector<1x1x1xf32>
    %29 = vector.extract %28[0, 0, 0] : f32 from vector<1x1x1xf32>
    %cst_12 = arith.constant dense<0xFF800000> : vector<16xf32>
    %30 = vector.multi_reduction <maximumf>, %6, %cst_12 [0] : vector<8x16xf32> to vector<16xf32>
    %31 = vector.shape_cast %30 : vector<16xf32> to vector<1x16xf32>
    %32 = vector.broadcast %31 : vector<1x16xf32> to vector<8x16xf32>
    %33 = arith.subf %6, %32 : vector<8x16xf32>
    %34 = math.exp %33 : vector<8x16xf32>
    %cst_13 = arith.constant dense<0.000000e+00> : vector<16xf32>
    %35 = vector.multi_reduction <add>, %34, %cst_13 [0] : vector<8x16xf32> to vector<16xf32>
    %36 = vector.shape_cast %35 : vector<16xf32> to vector<1x16xf32>
    %37 = vector.shape_cast %31 : vector<1x16xf32> to vector<1x1x16xf32>
    %c0_14 = arith.constant 0 : index
    %c0_15 = arith.constant 0 : index
    %c0_16 = arith.constant 0 : index
    %38 = vector.load %arg6[%c0_14, %c0_15, %c0_16] : memref<1x1x16xf32, #tpu.memory_space<vmem>>, vector<1x1x16xf32>
    tpu.vector_store %arg6[%c0_14, %c0_15, %c0_16], %37 {strides = array<i32>} : memref<1x1x16xf32, #tpu.memory_space<vmem>>, vector<1x1x16xf32>,
    %39 = vector.shape_cast %36 : vector<1x16xf32> to vector<1x1x16xf32>
    %c0_17 = arith.constant 0 : index
    %c0_18 = arith.constant 0 : index
    %c0_19 = arith.constant 0 : index
    %40 = vector.load %arg7[%c0_17, %c0_18, %c0_19] : memref<1x1x16xf32, #tpu.memory_space<vmem>>, vector<1x1x16xf32>
    tpu.vector_store %arg7[%c0_17, %c0_18, %c0_19], %39 {strides = array<i32>} : memref<1x1x16xf32, #tpu.memory_space<vmem>>, vector<1x1x16xf32>,
    %41 = tpu.iota {dimensions = array<i32: 1>} : vector<1x8x128xi32>
    %42 = tpu.iota {dimensions = array<i32: 2>} : vector<1x8x128xi32>
    %c0_i32 = arith.constant 0 : i32
    %43 = vector.broadcast %c0_i32 : i32 to vector<1x8x128xi32>
    %44 = arith.cmpi eq, %41, %43 : vector<1x8x128xi32>
    %c0_i32_20 = arith.constant 0 : i32
    %45 = vector.broadcast %c0_i32_20 : i32 to vector<1x8x128xi32>
    %46 = arith.cmpi eq, %42, %45 : vector<1x8x128xi32>
    %47 = arith.andi %44, %46 : vector<1x8x128xi1>
    %c0_i32_21 = arith.constant 0 : i32
    %48 = vector.broadcast %c0_i32_21 : i32 to vector<1x8x128xi32>
    %49 = arith.cmpi eq, %41, %48 : vector<1x8x128xi32>
    %c1_i32 = arith.constant 1 : i32
    %50 = vector.broadcast %c1_i32 : i32 to vector<1x8x128xi32>
    %51 = arith.cmpi eq, %42, %50 : vector<1x8x128xi32>
    %52 = arith.andi %49, %51 : vector<1x8x128xi1>
    %cst_22 = arith.constant 0.000000e+00 : f32
    %53 = vector.broadcast %29 : f32 to vector<1x8x128xf32>
    %54 = vector.broadcast %cst_22 : f32 to vector<1x8x128xf32>
    %55 = arith.select %52, %53, %54 : vector<1x8x128xi1>, vector<1x8x128xf32>
    %56 = vector.broadcast %25 : f32 to vector<1x8x128xf32>
    %57 = arith.select %47, %56, %55 : vector<1x8x128xi1>, vector<1x8x128xf32>
    %c0_23 = arith.constant 0 : index
    %c0_24 = arith.constant 0 : index
    %c0_25 = arith.constant 0 : index
    %58 = vector.load %arg5[%c0_23, %c0_24, %c0_25] : memref<1x8x128xf32, #tpu.memory_space<vmem>>, vector<1x8x128xf32>
    tpu.vector_store %arg5[%c0_23, %c0_24, %c0_25], %57 {strides = array<i32>} : memref<1x8x128xf32, #tpu.memory_space<vmem>>, vector<1x8x128xf32>,
    return
  }
  func.func @transform_0(%arg0: i32) -> (i32, i32) {
    %c0_i32 = arith.constant 0 : i32
    %c0_i32_0 = arith.constant 0 : i32
    return %arg0, %c0_i32 : i32, i32
  }
  func.func @transform_1(%arg0: i32) -> (i32, i32) {
    %c0_i32 = arith.constant 0 : i32
    %c0_i32_0 = arith.constant 0 : i32
    %c0_i32_1 = arith.constant 0 : i32
    return %c0_i32, %c0_i32_0 : i32, i32
  }
  func.func @transform_2(%arg0: i32) -> (i32, i32) {
    %c0_i32 = arith.constant 0 : i32
    %c0_i32_0 = arith.constant 0 : i32
    return %arg0, %c0_i32 : i32, i32
  }
  func.func @transform_3(%arg0: i32) -> (i32, i32) {
    %c0_i32 = arith.constant 0 : i32
    %c0_i32_0 = arith.constant 0 : i32
    %c0_i32_1 = arith.constant 0 : i32
    return %c0_i32, %c0_i32_0 : i32, i32
  }
  func.func @transform_4(%arg0: i32) -> (i32, i32, i32) {
    %c0_i32 = arith.constant 0 : i32
    %c0_i32_0 = arith.constant 0 : i32
    %c0_i32_1 = arith.constant 0 : i32
    return %arg0, %c0_i32, %c0_i32_0 : i32, i32, i32
  }
  func.func @transform_5(%arg0: i32) -> (i32, i32, i32) {
    %c0_i32 = arith.constant 0 : i32
    %c0_i32_0 = arith.constant 0 : i32
    %c0_i32_1 = arith.constant 0 : i32
    return %arg0, %c0_i32, %c0_i32_0 : i32, i32, i32
  }
  func.func @transform_6(%arg0: i32) -> (i32, i32, i32) {
    %c0_i32 = arith.constant 0 : i32
    %c0_i32_0 = arith.constant 0 : i32
    %c0_i32_1 = arith.constant 0 : i32
    return %arg0, %c0_i32, %c0_i32_0 : i32, i32, i32
  }
}

</mosaic_0001>

<llo_original>
// kernel: tpu_custom_call.1
$region0: #{tpu_custom_call.1}
  #allocation0 [shape = 'u32[]', space=smem, size = 0x4, offset = 0x4, fixed_abs, tag = 'smem constant byte address 0x4 - core index']
  #allocation1 [shape = 'u32[144,128]{1,0:T(1,128)}', space=vmem, size = 0x12000, scoped, tag = 'internal scratch']
  #allocation2 [shape = 'f32[1,1]{1,0:T(1,128)S(1)}', space=vmem, size = 0x200, scoped, tag = 'scoped memory for tpu_custom_call.1']
  %s0 = inlined_call_operand.hbm [shape: f32[16,32], index: 0, kind: input, shape index: {}]
  %s1 = inlined_call_operand.hbm [shape: f32[16,32], index: 1, kind: input, shape index: {}]
  %s2 = inlined_call_operand.hbm [shape: f32[16,32], index: 2, kind: input, shape index: {}]
  %s3 = inlined_call_operand.<no memory space> [shape: f32[1,1], index: 3, kind: input, shape index: {}]
  %s4 = inlined_call_operand.hbm [shape: f32[2,8,128], index: 4, kind: output, shape index: {0}]
  %s5 = inlined_call_operand.hbm [shape: f32[2,1,16], index: 5, kind: output, shape index: {1}]
  %s6 = inlined_call_operand.hbm [shape: f32[2,1,16], index: 6, kind: output, shape index: {2}]
  %7 = xla_tuple %s4, %s5, %s6
  %s8 = sld [smem:[#allocation0]]
  $region77: #{tpu_custom_call.1} parent=0
    _
  %s10 = ssub.s32 1, %s8
  %s11 = scalar_select 0, %s10, %s8
  %v12 = vstv %s3
  %13 = vst [vmem:[#allocation2] sm:$0x1] %v12
  $region1: #{tpu_custom_call.1} parent=0
    #allocation3 [shape = 'u8[8192]{0}', space=vmem, size = 0x2000, scoped, tag = 'input window, operand 0']
    #allocation4 [shape = 's32[2]{0}', space=sflag, size = 0x8, scoped, tag = 'scoped memory for tpu_custom_call.1']
    #allocation5 [shape = 's32[2]{0}', space=sflag, size = 0x8, scoped, tag = 'scoped memory for tpu_custom_call.1']
    #allocation6 [shape = 'u8[8192]{0}', space=vmem, size = 0x2000, scoped, tag = 'input window, operand 1, single buffered']
    #allocation7 [shape = 's32[1]{0}', space=sflag, size = 0x4, scoped, tag = 'scoped memory for tpu_custom_call.1']
    #allocation8 [shape = 'u8[8192]{0}', space=vmem, size = 0x2000, scoped, tag = 'input window, operand 2']
    #allocation9 [shape = 'u8[8192]{0}', space=vmem, size = 0x2000, scoped, tag = 'output window, operand 0']
    #allocation10 [shape = 'u8[1024]{0}', space=vmem, size = 0x400, scoped, tag = 'output window, operand 1']
    #allocation11 [shape = 's32[2]{0}', space=sflag, size = 0x8, scoped, tag = 'scoped memory for tpu_custom_call.1']
    #allocation12 [shape = 'u8[1024]{0}', space=vmem, size = 0x400, scoped, tag = 'output window, operand 2']
    %14 = vsyncpa [#allocation4], 0
    %s15 = scalar_lea.sflag [#allocation4], 1
    %16 = vsyncpa %s15, 0
    %17 = vsyncpa [#allocation7], 0
    %18 = vsyncpa [#allocation5], 0
    %s19 = scalar_lea.sflag [#allocation5], 1
    %20 = vsyncpa %s19, 0
    %21 = vsyncpa [#allocation11], 0
    %s22 = scalar_lea.sflag [#allocation11], 1
    %23 = vsyncpa %s22, 0
    loop: start=0, step=1, limit=4
    $region2: #{tpu_custom_call.1} parent=1 // loop_pre_header
      _
    $region3: #{tpu_custom_call.1} parent=1 // loop_header
      %s25 = sphi 0, %s29
      %p26 = scmp.ge.s32.totalorder %s25, 4
      %s35 = sphi 0, %s37
      %s38 = sphi 0, %s35
      %s39 = sphi 0, %s38
      %s55 = sphi 0, %s39
      %s59 = sphi 0, %s59
      %s61 = sphi 0, %s59
      %s62 = sphi 0, %s61
      %s76 = sphi 0, %s62
      %s82 = sphi 0, %s84
      %s85 = sphi 0, %s82
      %s86 = sphi 0, %s85
      %s102 = sphi 0, %s86
      %s106 = sphi 0, %s106
      %s108 = sphi 0, %s106
      %s109 = sphi 0, %s108
      %s123 = sphi 0, %s109
      %s129 = sphi 0, %s131
      %s132 = sphi 0, %s129
      %s133 = sphi 0, %s132
      %s149 = sphi 0, %s133
      %s155 = sphi 0, %s157
      %s158 = sphi 0, %s155
      %s159 = sphi 0, %s158
      %s175 = sphi 0, %s159
      %s181 = sphi 0, %s183
      %s184 = sphi 0, %s181
      %s185 = sphi 0, %s184
      %s201 = sphi 0, %s185
    $region4: #{tpu_custom_call.1} parent=1 // loop_header_branch
      %28 = sbr.rel (%p26) target = $region8
    $region5: #{tpu_custom_call.1} parent=1 // loop_body
      %s30 = ssub.s32 %s25, 1
      %s31 = ssub.s32 %s25, 2
      %s32 = sadd.s32 %s25, 1
      %s33 = ssub.s32 %s25, %s32
      %p34 = scmp.eq.s32.totalorder %s33, 0
      %s36 = sadd.s32 %s35, 1
      %s37 = scalar_select %p34, %s35, %s36
      %p40 = pneg %p34
      %p41 = scmp.eq.s32.totalorder %s25, 1
      %p42 = por %p40, %p41
      %p43 = scmp.ne.s32.totalorder %s35, %s38
      %p44 = scmp.eq.s32.totalorder %s25, 0
      %p45 = por %p43, %p44
      %p46 = scmp.ne.s32.totalorder %s35, %s38
      %p47 = scmp.eq.s32.totalorder %s30, 1
      %p48 = por %p46, %p47
      %p49 = scmp.ne.s32.totalorder %s38, %s39
      %p50 = scmp.eq.s32.totalorder %s30, 0
      %p51 = por %p49, %p50
      %p52 = scmp.ne.s32.totalorder %s38, %s39
      %p53 = scmp.eq.s32.totalorder %s31, 1
      %p54 = por %p52, %p53
      %p56 = scmp.ne.s32.totalorder %s39, %s55
      %p57 = scmp.eq.s32.totalorder %s31, 0
      %p58 = por %p56, %p57
      %s60 = sadd.s32 %s59, 1
      %p63 = scmp.eq.s32.totalorder %s25, 1
      %p64 = scmp.ne.s32.totalorder %s59, %s61
      %p65 = scmp.eq.s32.totalorder %s25, 0
      %p66 = por %p64, %p65
      %p67 = scmp.ne.s32.totalorder %s59, %s61
      %p68 = scmp.eq.s32.totalorder %s30, 1
      %p69 = por %p67, %p68
      %p70 = scmp.ne.s32.totalorder %s61, %s62
      %p71 = scmp.eq.s32.totalorder %s30, 0
      %p72 = por %p70, %p71
      %p73 = scmp.ne.s32.totalorder %s61, %s62
      %p74 = scmp.eq.s32.totalorder %s31, 1
      %p75 = por %p73, %p74
      %p77 = scmp.ne.s32.totalorder %s62, %s76
      %p78 = scmp.eq.s32.totalorder %s31, 0
      %p79 = por %p77, %p78
      %s80 = ssub.s32 %s25, %s32
      %p81 = scmp.eq.s32.totalorder %s80, 0
      %s83 = sadd.s32 %s82, 1
      %s84 = scalar_select %p81, %s82, %s83
      %p87 = pneg %p81
      %p88 = scmp.eq.s32.totalorder %s25, 1
      %p89 = por %p87, %p88
      %p90 = scmp.ne.s32.totalorder %s82, %s85
      %p91 = scmp.eq.s32.totalorder %s25, 0
      %p92 = por %p90, %p91
      %p93 = scmp.ne.s32.totalorder %s82, %s85
      %p94 = scmp.eq.s32.totalorder %s30, 1
      %p95 = por %p93, %p94
      %p96 = scmp.ne.s32.totalorder %s85, %s86
      %p97 = scmp.eq.s32.totalorder %s30, 0
      %p98 = por %p96, %p97
      %p99 = scmp.ne.s32.totalorder %s85, %s86
      %p100 = scmp.eq.s32.totalorder %s31, 1
      %p101 = por %p99, %p100
      %p103 = scmp.ne.s32.totalorder %s86, %s102
      %p104 = scmp.eq.s32.totalorder %s31, 0
      %p105 = por %p103, %p104
      %s107 = sadd.s32 %s106, 1
      %p110 = scmp.eq.s32.totalorder %s25, 1
      %p111 = scmp.ne.s32.totalorder %s106, %s108
      %p112 = scmp.eq.s32.totalorder %s25, 0
      %p113 = por %p111, %p112
      %p114 = scmp.ne.s32.totalorder %s106, %s108
      %p115 = scmp.eq.s32.totalorder %s30, 1
      %p116 = por %p114, %p115
      %p117 = scmp.ne.s32.totalorder %s108, %s109
      %p118 = scmp.eq.s32.totalorder %s30, 0
      %p119 = por %p117, %p118
      %p120 = scmp.ne.s32.totalorder %s108, %s109
      %p121 = scmp.eq.s32.totalorder %s31, 1
      %p122 = por %p120, %p121
      %p124 = scmp.ne.s32.totalorder %s109, %s123
      %p125 = scmp.eq.s32.totalorder %s31, 0
      %p126 = por %p124, %p125
      %s127 = ssub.s32 %s25, %s32
      %p128 = scmp.eq.s32.totalorder %s127, 0
      %s130 = sadd.s32 %s129, 1
      %s131 = scalar_select %p128, %s129, %s130
      %p134 = pneg %p128
      %p135 = scmp.eq.s32.totalorder %s25, 1
      %p136 = por %p134, %p135
      %p137 = scmp.ne.s32.totalorder %s129, %s132
      %p138 = scmp.eq.s32.totalorder %s25, 0
      %p139 = por %p137, %p138
      %p140 = scmp.ne.s32.totalorder %s129, %s132
      %p141 = scmp.eq.s32.totalorder %s30, 1
      %p142 = por %p140, %p141
      %p143 = scmp.ne.s32.totalorder %s132, %s133
      %p144 = scmp.eq.s32.totalorder %s30, 0
      %p145 = por %p143, %p144
      %p146 = scmp.ne.s32.totalorder %s132, %s133
      %p147 = scmp.eq.s32.totalorder %s31, 1
      %p148 = por %p146, %p147
      %p150 = scmp.ne.s32.totalorder %s133, %s149
      %p151 = scmp.eq.s32.totalorder %s31, 0
      %p152 = por %p150, %p151
      %s153 = ssub.s32 %s25, %s32
      %p154 = scmp.eq.s32.totalorder %s153, 0
      %s156 = sadd.s32 %s155, 1
      %s157 = scalar_select %p154, %s155, %s156
      %p160 = pneg %p154
      %p161 = scmp.eq.s32.totalorder %s25, 1
      %p162 = por %p160, %p161
      %p163 = scmp.ne.s32.totalorder %s155, %s158
      %p164 = scmp.eq.s32.totalorder %s25, 0
      %p165 = por %p163, %p164
      %p166 = scmp.ne.s32.totalorder %s155, %s158
      %p167 = scmp.eq.s32.totalorder %s30, 1
      %p168 = por %p166, %p167
      %p169 = scmp.ne.s32.totalorder %s158, %s159
      %p170 = scmp.eq.s32.totalorder %s30, 0
      %p171 = por %p169, %p170
      %p172 = scmp.ne.s32.totalorder %s158, %s159
      %p173 = scmp.eq.s32.totalorder %s31, 1
      %p174 = por %p172, %p173
      %p176 = scmp.ne.s32.totalorder %s159, %s175
      %p177 = scmp.eq.s32.totalorder %s31, 0
      %p178 = por %p176, %p177
      %s179 = ssub.s32 %s25, %s32
      %p180 = scmp.eq.s32.totalorder %s179, 0
      %s182 = sadd.s32 %s181, 1
      %s183 = scalar_select %p180, %s181, %s182
      %p186 = pneg %p180
      %p187 = scmp.eq.s32.totalorder %s25, 1
      %p188 = por %p186, %p187
      %p189 = scmp.ne.s32.totalorder %s181, %s184
      %p190 = scmp.eq.s32.totalorder %s25, 0
      %p191 = por %p189, %p190
      %p192 = scmp.ne.s32.totalorder %s181, %s184
      %p193 = scmp.eq.s32.totalorder %s30, 1
      %p194 = por %p192, %p193
      %p195 = scmp.ne.s32.totalorder %s184, %s185
      %p196 = scmp.eq.s32.totalorder %s30, 0
      %p197 = por %p195, %p196
      %p198 = scmp.ne.s32.totalorder %s184, %s185
      %p199 = scmp.eq.s32.totalorder %s31, 1
      %p200 = por %p198, %p199
      %p202 = scmp.ne.s32.totalorder %s185, %s201
      %p203 = scmp.eq.s32.totalorder %s31, 0
      %p204 = por %p202, %p203
      %p205 = scmp.le.s32.totalorder 1, %s25
      %p206 = scmp.lt.s32.totalorder %s25, 3
      %p207 = pnand %p205, %p206
      %p208 = pneg %p207
      // Predicated region
      $region9: #{tpu_custom_call.1} parent=5 // pred_check
        _
      $region10: #{tpu_custom_call.1} parent=5 // pred_check_branch
        %210 = sbr.rel (%p207) target = $region12
      $region11: #{tpu_custom_call.1} parent=5 // pred_region
        %s211 = ssub.s32 %s25, 1
        // Predicated region
        $region13: #{tpu_custom_call.1} parent=11 // pred_check
          %p212 = pneg %p72
        $region14: #{tpu_custom_call.1} parent=11 // pred_check_branch
          %214 = sbr.rel (%p212) target = $region16
        $region15: #{tpu_custom_call.1} parent=11 // pred_region
          %s216 = ssub.s32 256, 256
          %217 = vsyncadd [#allocation7], %s216
          %s218 = sshll.u32 [#allocation6], 4
          %s219 = int_to_ptr.vmem [resolvable:$true] %s218
          %224 = dma.hbm_to_vmem [thread:$0]  %s1, 256, %s219, [#allocation7], 128, 128, 8
        $region16: #{tpu_custom_call.1} parent=11 // pred_fallthru
          _
        // Predicated region
        $region17: #{tpu_custom_call.1} parent=11 // pred_check
          %p225 = pneg %p119
        $region18: #{tpu_custom_call.1} parent=11 // pred_check_branch
          %227 = sbr.rel (%p225) target = $region20
        $region19: #{tpu_custom_call.1} parent=11 // pred_region
          _
        $region20: #{tpu_custom_call.1} parent=11 // pred_fallthru
          _
      $region12: #{tpu_custom_call.1} parent=5 // pred_fallthru
        _
      %p228 = scmp.lt.s32.totalorder %s25, 2
      // Predicated region
      $region21: #{tpu_custom_call.1} parent=5 // pred_check
        %p229 = pneg %p228
      $region22: #{tpu_custom_call.1} parent=5 // pred_check_branch
        %231 = sbr.rel (%p229) target = $region24
      $region23: #{tpu_custom_call.1} parent=5 // pred_region
        // Predicated region
        $region25: #{tpu_custom_call.1} parent=23 // pred_check
          %p232 = pneg %p45
        $region26: #{tpu_custom_call.1} parent=23 // pred_check_branch
          %234 = sbr.rel (%p232) target = $region28
        $region27: #{tpu_custom_call.1} parent=23 // pred_region
          %s235 = sand.u32 %s25, 1
          %s236 = scalar_lea.sflag [#allocation4], %s235
          %s237 = sand.u32 %s35, 1
          %s238 = smul.addr %s237, 8
          %s239 = scalar_lea.vmem [#allocation3], %s238
          %s241 = ssub.s32 128, 128
          %242 = vsyncadd %s236, %s241
          %s243 = smul.addr %s25, 128
          %s244 = scalar_lea.hbm %s0, %s243
          %s246 = sshll.u32 %s239, 4
          %s247 = int_to_ptr.vmem [resolvable:$true] %s246
          %249 = dma.hbm_to_vmem [thread:$0]  %s244, 128, %s247, %s236
        $region28: #{tpu_custom_call.1} parent=23 // pred_fallthru
          _
        // Predicated region
        $region29: #{tpu_custom_call.1} parent=23 // pred_check
          %p250 = pneg %p92
        $region30: #{tpu_custom_call.1} parent=23 // pred_check_branch
          %252 = sbr.rel (%p250) target = $region32
        $region31: #{tpu_custom_call.1} parent=23 // pred_region
          %s253 = sand.u32 %s25, 1
          %s254 = scalar_lea.sflag [#allocation4], %s253
          %s255 = sand.u32 %s82, 1
          %s256 = smul.addr %s255, 8
          %s257 = scalar_lea.vmem [#allocation8], %s256
          %s259 = ssub.s32 128, 128
          %260 = vsyncadd %s254, %s259
          %s261 = smul.addr %s25, 128
          %s262 = scalar_lea.hbm %s2, %s261
          %s264 = sshll.u32 %s257, 4
          %s265 = int_to_ptr.vmem [resolvable:$true] %s264
          %267 = dma.hbm_to_vmem [thread:$0]  %s262, 128, %s265, %s254
        $region32: #{tpu_custom_call.1} parent=23 // pred_fallthru
          _
      $region24: #{tpu_custom_call.1} parent=5 // pred_fallthru
        _
      %p268 = scmp.le.s32.totalorder 1, %s25
      %p269 = scmp.lt.s32.totalorder %s25, 3
      %p270 = pnand %p268, %p269
      %p271 = pneg %p270
      // Predicated region
      $region33: #{tpu_custom_call.1} parent=5 // pred_check
        _
      $region34: #{tpu_custom_call.1} parent=5 // pred_check_branch
        %273 = sbr.rel (%p270) target = $region36
      $region35: #{tpu_custom_call.1} parent=5 // pred_region
        %s274 = ssub.s32 %s25, 1
        %s275 = sand.u32 %s30, 1
        %s276 = scalar_lea.sflag [#allocation4], %s275
        %s277 = sand.u32 %s38, 1
        %s278 = smul.addr %s277, 8
        %s279 = scalar_lea.vmem [#allocation3], %s278
        // Predicated region
        $region37: #{tpu_custom_call.1} parent=35 // pred_check
          %p280 = pneg %p51
        $region38: #{tpu_custom_call.1} parent=35 // pred_check_branch
          %282 = sbr.rel (%p280) target = $region40
        $region39: #{tpu_custom_call.1} parent=35 // pred_region
          %283 = dma.done %s276, 128
        $region40: #{tpu_custom_call.1} parent=35 // pred_fallthru
          _
        // Predicated region
        $region41: #{tpu_custom_call.1} parent=35 // pred_check
          %p284 = pneg %p72
        $region42: #{tpu_custom_call.1} parent=35 // pred_check_branch
          %286 = sbr.rel (%p284) target = $region44
        $region43: #{tpu_custom_call.1} parent=35 // pred_region
          %287 = dma.done [#allocation7], 256
        $region44: #{tpu_custom_call.1} parent=35 // pred_fallthru
          _
        %s288 = sand.u32 %s30, 1
        %s289 = scalar_lea.sflag [#allocation4], %s288
        %s290 = sand.u32 %s85, 1
        %s291 = smul.addr %s290, 8
        %s292 = scalar_lea.vmem [#allocation8], %s291
        // Predicated region
        $region45: #{tpu_custom_call.1} parent=35 // pred_check
          %p293 = pneg %p98
        $region46: #{tpu_custom_call.1} parent=35 // pred_check_branch
          %295 = sbr.rel (%p293) target = $region48
        $region47: #{tpu_custom_call.1} parent=35 // pred_region
          %296 = dma.done %s289, 128
        $region48: #{tpu_custom_call.1} parent=35 // pred_fallthru
          _
        %s297 = sand.u32 %s30, 1
        %s298 = scalar_lea.sflag [#allocation4], %s297
        %s299 = sand.u32 %s38, 1
        %s300 = smul.addr %s299, 8
        %s301 = scalar_lea.vmem [#allocation3], %s300
        %p302 = pneg %p51
        %p303 = pneg %p48
        %p304 = pneg %p72
        %p305 = pneg %p69
        %s306 = sand.u32 %s30, 1
        %s307 = scalar_lea.sflag [#allocation4], %s306
        %s308 = sand.u32 %s85, 1
        %s309 = smul.addr %s308, 8
        %s310 = scalar_lea.vmem [#allocation8], %s309
        %p311 = pneg %p98
        %p312 = pneg %p95
        %p313 = pneg %p119
        %p314 = pneg %p116
        %p315 = pneg %p145
        %p316 = pneg %p142
        %s317 = sand.u32 %s132, 1
        %s318 = scalar_lea.sflag [#allocation5], %s317
        %s319 = sand.u32 %s132, 1
        %s320 = smul.addr %s319, 8
        %s321 = scalar_lea.vmem [#allocation9], %s320
        %p322 = pneg %p171
        %p323 = pneg %p168
        %s324 = sand.u32 %s30, 1
        %s325 = scalar_lea.sflag [#allocation11], %s324
        %s326 = sand.u32 %s158, 1
        %s327 = scalar_lea.vmem [#allocation10], %s326
        %p328 = pneg %p197
        %p329 = pneg %p194
        %s330 = sand.u32 %s30, 1
        %s331 = scalar_lea.sflag [#allocation11], %s330
        %s332 = sand.u32 %s184, 1
        %s333 = scalar_lea.vmem [#allocation12], %s332
        %v334 = vld [vmem:[#allocation2] sm:$0x1]
        %s335 = vtos %v334
        %v336 = vld [vmem:[%s279] sm:$0xff]
        %v337 = vld [vmem:[#allocation6] sm:$0xff]
        %v338 = vld [vmem:[#allocation6 + $0x8] sm:$0xff]
        %vm339 = vcmask 261120
        %v341 = vsel %vm339, %v336, 0
        %v344 = vsel %vm339, %v337, 0
        %v347 = vsel %vm339, %v338, 0
        %349 = vmatprep.subr.mxu0 0.0
        %350 = vmatpush1.xpose.msra.mxu0 0.0
        %351 = vmatprep.subr.mxu0 0.0
        %352 = vmatpush1.xpose.msra.mxu0 0.0
        %353 = vmatprep.subr.mxu0 0.0
        %354 = vmatpush1.xpose.msra.mxu0 0.0
        %355 = vmatprep.subr.mxu0 0.0
        %356 = vmatpush1.xpose.msra.mxu0 0.0
        %357 = vmatprep.subr.mxu0 0.0
        %358 = vmatpush1.xpose.msra.mxu0 0.0
        %359 = vmatprep.subr.mxu0 0.0
        %360 = vmatpush1.xpose.msra.mxu0 0.0
        %361 = vmatprep.subr.mxu0 0.0
        %362 = vmatpush1.xpose.msra.mxu0 0.0
        %363 = vmatprep.subr.mxu0 0.0
        %364 = vmatpush1.xpose.msra.mxu0 0.0
        %365 = vmatprep.subr.mxu0 0.0
        %366 = vmatpush1.xpose.msra.mxu0 0.0
        %367 = vmatprep.subr.mxu0 0.0
        %368 = vmatpush1.xpose.msra.mxu0 0.0
        %369 = vmatprep.subr.mxu0 0.0
        %370 = vmatpush1.xpose.msra.mxu0 0.0
        %371 = vmatprep.subr.mxu0 0.0
        %372 = vmatpush1.xpose.msra.mxu0 0.0
        %373 = vmatprep.subr.mxu0 0.0
        %374 = vmatpush1.xpose.msra.mxu0 0.0
        %375 = vmatprep.subr.mxu0 0.0
        %376 = vmatpush1.xpose.msra.mxu0 0.0
        %377 = vmatprep.subr.mxu0 0.0
        %378 = vmatpush1.xpose.msra.mxu0 %v347
        %379 = vmatprep.subr.mxu0 0.0
        %380 = vmatpush1.xpose.msra.mxu0 %v344
        %381 = vmatprep.subr.mxu0 0.0
        %382 = vmatpush2.xpose.msra.mxu0 0.0
        %383 = vmatprep.subr.mxu0 0.0
        %384 = vmatpush2.xpose.msra.mxu0 0.0
        %385 = vmatprep.subr.mxu0 0.0
        %386 = vmatpush2.xpose.msra.mxu0 0.0
        %387 = vmatprep.subr.mxu0 0.0
        %388 = vmatpush2.xpose.msra.mxu0 0.0
        %389 = vmatprep.subr.mxu0 0.0
        %390 = vmatpush2.xpose.msra.mxu0 0.0
        %391 = vmatprep.subr.mxu0 0.0
        %392 = vmatpush2.xpose.msra.mxu0 0.0
        %393 = vmatprep.subr.mxu0 0.0
        %394 = vmatpush2.xpose.msra.mxu0 0.0
        %395 = vmatprep.subr.mxu0 0.0
        %396 = vmatpush2.xpose.msra.mxu0 0.0
        %397 = vmatprep.subr.mxu0 0.0
        %398 = vmatpush2.xpose.msra.mxu0 0.0
        %399 = vmatprep.subr.mxu0 0.0
        %400 = vmatpush2.xpose.msra.mxu0 0.0
        %401 = vmatprep.subr.mxu0 0.0
        %402 = vmatpush2.xpose.msra.mxu0 0.0
        %403 = vmatprep.subr.mxu0 0.0
        %404 = vmatpush2.xpose.msra.mxu0 0.0
        %405 = vmatprep.subr.mxu0 0.0
        %406 = vmatpush2.xpose.msra.mxu0 0.0
        %407 = vmatprep.subr.mxu0 0.0
        %408 = vmatpush2.xpose.msra.mxu0 0.0
        %409 = vmatprep.subr.mxu0 0.0
        %410 = vmatpush2.xpose.msra.mxu0 0.0
        %411 = vmatprep.subr.mxu0 0.0
        %412 = vmatpush2.xpose.msra.mxu0 0.0
        %413 = vmatprep.mubr.f32.mxu0 0.0
        %414 = vmatmul.mubr.f32.gmra.mxu0 %v341
        %v415 = vpop.f32.mrf.mxu0
        %v416 = vadd.f32 0.0, %v415
        %v417 = vpop.f32.mrf.mxu0
        %418 = vdwg.mxu0
        %v419 = vstv %s335
        %v420 = vmul.f32 %v416, %v419
        %vm421 = vcmask 130048
        %v422 = vsel %vm421, %v420, -inf
        %423 = vmax.xlane.f32.xlu0 %v422
        %v424 = vpop.xlane.xlu0 %423
        %v425 = vsub.f32 %v420, %v424
        %v426 = vmul.f32 %v425, 1.442695
        %v427 = vpow.pop %v426
        %v428 = vsel %vm421, %v427, 0.0
        %429 = vadd.xlane.f32.xlu0 %v428
        %v430 = vpop.xlane.xlu0 %429
        %v431 = vlog2.pop %v430
        %v432 = vmul.f32 %v431, 0.6931472
        %v433 = vadd.f32 %v424, %v432
        %v434 = vld [vmem:[%s292] sm:$0xff]
        %v435 = vmul.f32 %v336, %v434
        %v436 = vsel %vm339, %v435, 0.0
        %437 = vadd.xlane.f32.xlu0 %v436
        %v438 = vpop.xlane.xlu0 %437
        %v439 = vmul.f32 %v419, %v438
        %vm440 = vcmask 7168
        %v441 = vsel %vm440, %v433, 0.0
        %442 = vadd.xlane.f32.xlu0 %v441
        %v443 = vpop.xlane.xlu0 %442
        %v444 = vrot.slane %v443, 4
        %v445 = vadd.f32 %v443, %v444
        %v446 = vrot.slane %v445, 2
        %v447 = vadd.f32 %v445, %v446
        %v448 = vrot.slane %v447, 1
        %v449 = vadd.f32 %v447, %v448
        %s450 = vtos %v449
        %v451 = vsel %vm440, %v439, 0.0
        %452 = vadd.xlane.f32.xlu0 %v451
        %v453 = vpop.xlane.xlu0 %452
        %v454 = vrot.slane %v453, 4
        %v455 = vadd.f32 %v453, %v454
        %v456 = vrot.slane %v455, 2
        %v457 = vadd.f32 %v455, %v456
        %v458 = vrot.slane %v457, 1
        %v459 = vadd.f32 %v457, %v458
        %s460 = vtos %v459
        %v461 = vrot.slane %v422, 4
        %v462 = vmax.f32 %v422, %v461
        %v463 = vrot.slane %v462, 2
        %v464 = vmax.f32 %v462, %v463
        %v465 = vrot.slane %v464, 1
        %v466 = vmax.f32 %v464, %v465
        %v467 = vsub.f32 %v420, %v466
        %v468 = vmul.f32 %v467, 1.442695
        %v469 = vpow.pop %v468
        %v470 = vsel %vm421, %v469, 0.0
        %v471 = vrot.slane %v470, 4
        %v472 = vadd.f32 %v470, %v471
        %v473 = vrot.slane %v472, 2
        %v474 = vadd.f32 %v472, %v473
        %v475 = vrot.slane %v474, 1
        %v476 = vadd.f32 %v474, %v475
        %vm477 = vcmask 122880
        %478 = vst.msk [vmem:[%s327] sm:$0x1] %vm477, %v466
        %479 = vst.msk [vmem:[%s333] sm:$0x1] %vm477, %v476
        %v480 = vlaneseq
        %v481 = vshrl.u32 %v480, 7
        %v482 = vlaneseq
        %v483 = vand.u32 %v482, 127
        %vm484 = vcmp.eq.s32.totalorder %v481, 0
        %vm485 = vcmp.eq.s32.totalorder %v483, 0
        %vm486 = vmand %vm484, %vm485
        %vm487 = vcmp.eq.s32.totalorder %v483, 1
        %vm488 = vmand %vm484, %vm487
        %v489 = vstv %s460
        %v490 = vsel %vm488, %v489, 0.0
        %v491 = vstv %s450
        %v492 = vsel %vm486, %v491, %v490
        %493 = vst [vmem:[%s321] sm:$0xff] %v492
        %s494 = sand.u32 %s132, 1
        %s495 = scalar_lea.sflag [#allocation5], %s494
        %s496 = sand.u32 %s132, 1
        %s497 = smul.addr %s496, 8
        %s498 = scalar_lea.vmem [#allocation9], %s497
        %s499 = sand.u32 %s30, 1
        %s500 = scalar_lea.sflag [#allocation11], %s499
        %s501 = sand.u32 %s158, 1
        %s502 = scalar_lea.vmem [#allocation10], %s501
        %s503 = sand.u32 %s30, 1
        %s504 = scalar_lea.sflag [#allocation11], %s503
        %s505 = sand.u32 %s184, 1
        %s506 = scalar_lea.vmem [#allocation12], %s505
        // Predicated region
        $region49: #{tpu_custom_call.1} parent=35 // pred_check
          %p507 = pneg %p142
        $region50: #{tpu_custom_call.1} parent=35 // pred_check_branch
          %509 = sbr.rel (%p507) target = $region52
        $region51: #{tpu_custom_call.1} parent=35 // pred_region
          %s511 = ssub.s32 128, 128
          %512 = vsyncadd %s495, %s511
          %s513 = smul.addr %s30, 128
          %s514 = scalar_lea.hbm %s4, %s513
          %s516 = sshll.u32 %s498, 4
          %s517 = int_to_ptr.vmem [resolvable:$true] %s516
          %519 = dma.vmem_to_hbm [thread:$0]  %s517, 128, %s514, %s495
        $region52: #{tpu_custom_call.1} parent=35 // pred_fallthru
          _
        // Predicated region
        $region53: #{tpu_custom_call.1} parent=35 // pred_check
          %p520 = pneg %p168
        $region54: #{tpu_custom_call.1} parent=35 // pred_check_branch
          %522 = sbr.rel (%p520) target = $region56
        $region55: #{tpu_custom_call.1} parent=35 // pred_region
          %s524 = ssub.s32 16, 16
          %525 = vsyncadd %s500, %s524
          %s526 = smul.addr %s30, 16
          %s527 = scalar_lea.hbm %s5, %s526
          %s529 = sshll.u32 %s502, 4
          %s530 = int_to_ptr.vmem [resolvable:$true] %s529
          %532 = dma.vmem_to_hbm [thread:$0]  %s530, 16, %s527, %s500
        $region56: #{tpu_custom_call.1} parent=35 // pred_fallthru
          _
        // Predicated region
        $region57: #{tpu_custom_call.1} parent=35 // pred_check
          %p533 = pneg %p194
        $region58: #{tpu_custom_call.1} parent=35 // pred_check_branch
          %535 = sbr.rel (%p533) target = $region60
        $region59: #{tpu_custom_call.1} parent=35 // pred_region
          %s537 = ssub.s32 16, 16
          %538 = vsyncadd %s504, %s537
          %s539 = smul.addr %s30, 16
          %s540 = scalar_lea.hbm %s6, %s539
          %s542 = sshll.u32 %s506, 4
          %s543 = int_to_ptr.vmem [resolvable:$true] %s542
          %545 = dma.vmem_to_hbm [thread:$0]  %s543, 16, %s540, %s504
        $region60: #{tpu_custom_call.1} parent=35 // pred_fallthru
          _
      $region36: #{tpu_custom_call.1} parent=5 // pred_fallthru
        _
      %p546 = scmp.le.s32.totalorder 2, %s25
      // Predicated region
      $region61: #{tpu_custom_call.1} parent=5 // pred_check
        %p547 = pneg %p546
      $region62: #{tpu_custom_call.1} parent=5 // pred_check_branch
        %549 = sbr.rel (%p547) target = $region64
      $region63: #{tpu_custom_call.1} parent=5 // pred_region
        %s550 = ssub.s32 %s25, 2
        // Predicated region
        $region65: #{tpu_custom_call.1} parent=63 // pred_check
          %p551 = pneg %p148
        $region66: #{tpu_custom_call.1} parent=63 // pred_check_branch
          %553 = sbr.rel (%p551) target = $region68
        $region67: #{tpu_custom_call.1} parent=63 // pred_region
          %s554 = sand.u32 %s133, 1
          %s555 = scalar_lea.sflag [#allocation5], %s554
          %s556 = sand.u32 %s133, 1
          %s557 = smul.addr %s556, 8
          %s558 = scalar_lea.vmem [#allocation9], %s557
          %559 = dma.done %s555, 128
        $region68: #{tpu_custom_call.1} parent=63 // pred_fallthru
          _
        // Predicated region
        $region69: #{tpu_custom_call.1} parent=63 // pred_check
          %p560 = pneg %p174
        $region70: #{tpu_custom_call.1} parent=63 // pred_check_branch
          %562 = sbr.rel (%p560) target = $region72
        $region71: #{tpu_custom_call.1} parent=63 // pred_region
          %s563 = sand.u32 %s31, 1
          %s564 = scalar_lea.sflag [#allocation11], %s563
          %s565 = sand.u32 %s159, 1
          %s566 = scalar_lea.vmem [#allocation10], %s565
          %567 = dma.done %s564, 16
        $region72: #{tpu_custom_call.1} parent=63 // pred_fallthru
          _
        // Predicated region
        $region73: #{tpu_custom_call.1} parent=63 // pred_check
          %p568 = pneg %p200
        $region74: #{tpu_custom_call.1} parent=63 // pred_check_branch
          %570 = sbr.rel (%p568) target = $region76
        $region75: #{tpu_custom_call.1} parent=63 // pred_region
          %s571 = sand.u32 %s31, 1
          %s572 = scalar_lea.sflag [#allocation11], %s571
          %s573 = sand.u32 %s185, 1
          %s574 = scalar_lea.vmem [#allocation12], %s573
          %575 = dma.done %s572, 16
        $region76: #{tpu_custom_call.1} parent=63 // pred_fallthru
          _
      $region64: #{tpu_custom_call.1} parent=5 // pred_fallthru
        _
    $region6: #{tpu_custom_call.1} parent=1 // loop_footer
      %s29 = sadd.s32 1, %s25
    $region7: #{tpu_custom_call.1} parent=1 // loop_footer_branch
      %24 = sbr.rel target = $region3
    $region8: #{tpu_custom_call.1} parent=1 // loop_exit
      _
    %576 = vsyncpa [#allocation4], 1
    %s577 = scalar_lea.sflag [#allocation4], 1
    %578 = vsyncpa %s577, 1
    %579 = vsyncpa [#allocation7], 1
    %580 = vsyncpa [#allocation5], 1
    %s581 = scalar_lea.sflag [#allocation5], 1
    %582 = vsyncpa %s581, 1
    %583 = vsyncpa [#allocation11], 1
    %s584 = scalar_lea.sflag [#allocation11], 1
    %585 = vsyncpa %s584, 1

</llo_original>
